<compile_context>
chip_gen: v7x
topology: tpu7x:2x2x1
jax: 0.10.0
libtpu: 0.0.40
codegen_flags: <defaults>
</compile_context>

<pallas_src>
import functools

import jax
import jax.numpy as jnp
from jax.experimental import pallas as pl
from jax.experimental.pallas import tpu as pltpu

# FontGeneratorDataset constants.
IMAGE_MEAN = 0.5
IMAGE_VAR = 0.5
INV_VAR = 1.0 / IMAGE_VAR

# MyPSPLoss(mode='mse', onSharp=2, rareP=3, separateN=1, hingeLoss=1) hyper-params.
ON_SHARP = 2.0
RARE_P = 3.0
HINGE_EPS = 0.001          # ImageHingeLoss.eps
RARE_EPS = 0.001           # ImageRarePixelLoss.eps
UPPER_LIM = 0.7
LOWER_LIM = 0.3
# Teacher thresholds pre-scaled into normalized-teacher space:
#   t_img = t*VAR + MEAN  =>  (t_img < LOWER) <=> (t < T_LO), etc.
# (can differ from the reference comparison by 1 ulp exactly at a band edge)
T_LO = (LOWER_LIM - IMAGE_MEAN) / IMAGE_VAR
T_HI = (UPPER_LIM - IMAGE_MEAN) / IMAGE_VAR
HINGE_1PEPS = 1.0 + HINGE_EPS

# Tiling knobs.
BLOCK_BYTE_BUDGET = 2 * 1024 * 1024   # ~2 MiB per input block (1-4 MiB sweet spot,
                                      #  2 in x 2 bufs x 2 MiB fits v7x's 64 MiB VMEM)
MAX_CHUNKS_PER_TILE = 128             # bounds the static in-kernel unroll (<=16384 cols)
MIN_GRID_STEPS = 4                    # keep the BlockSpec pipeline busy
NUM_PARALLEL_CHUNKS = 2               # v7x: 2 TensorCores; harmless on v5e/v6e


def _cdiv(a, b):
    return -(-a // b)


def _mypsp_loss_kernel(o_ref, t_ref, main_ref, tsum_ref, u_ref, l_ref, *,
                       on_sharp, cols_per_chunk, cols_padded, n_valid,
                       needs_mask):
    """One (parallel-chunk, column-tile) grid step.

    Accumulates lane-shaped (b, pack, 128) partial sums directly into the
    output blocks (which stay resident across the column sweep of a chunk):
      main : mse + on_sharp*sharp + hinge   (masked to the true n)
      tsum : sum of normalized teachers
      u    : log(1-o+eps) on dark-teacher pixels   (uValue of the rare loss)
      l    : log(o+eps)   on bright-teacher pixels (lValue of the rare loss)
    """
    p = pl.program_id(0)              # parallel column chunk (TensorCore on v7x)
    i = pl.program_id(1)              # column tile within the chunk
    b, pack, tile_cols = o_ref.shape
    n_chunks = tile_cols // 128

    @pl.when(i == 0)
    def _init():
        main_ref[...] = jnp.zeros_like(main_ref)
        tsum_ref[...] = jnp.zeros_like(tsum_ref)
        u_ref[...] = jnp.zeros_like(u_ref)
        l_ref[...] = jnp.zeros_like(l_ref)

    if needs_mask:
        # flat index of element (sublane s, lane c) of chunk k of this tile:
        #   s*cols_padded + p*cols_per_chunk + i*tile_cols + k*128 + c
        sub_i = jax.lax.broadcasted_iota(jnp.int32, (pack, 128), 0)
        lane_i = jax.lax.broadcasted_iota(jnp.int32, (pack, 128), 1)
        base_flat = sub_i * cols_padded + lane_i          # hoisted, reused per chunk
        col_base = p * cols_per_chunk + i * tile_cols

    # Static unroll over lane-aligned 128-wide chunks: full-lane accumulator
    # stores (no vst.msk), no per-grid-step XLU reduce, 1024-way partial sums.
    for k in range(n_chunks):
        sl = pl.ds(k * 128, 128)
        o = o_ref[:, :, sl].astype(jnp.float32)           # raw network outputs
        t = t_ref[:, :, sl].astype(jnp.float32)           # normalized teachers

        # ---- main loss: MSE(Normalize(outputs), targets) --------------------
        diff = (o - IMAGE_MEAN) * INV_VAR - t
        mse = diff * diff

        # ---- ImageSharpLoss: d = o - 1[o>=.5]; sharp = d*d ------------------
        o_lt_half = o < 0.5
        d = o - jnp.where(o_lt_half, 0.0, 1.0)
        sharp = d * d

        # ---- ImageHingeLoss (complementary teacher branches -> one log) -----
        #   arg+eps = (1+eps) + where(t>=0, where(o<.5, o, 0), -where(o<.5, 0, o))
        u_o = jnp.where(o_lt_half, o, 0.0)
        harg = jnp.where(t >= 0.0, u_o, u_o - o)
        hinge = jnp.log(harg + HINGE_1PEPS)               # loss term is -hinge

        combined = mse + on_sharp * sharp - hinge

        # ---- ImageRarePixelLoss bands (mutually exclusive) -> one log -------
        is_dark = t < T_LO            # t_img < LOWER_LIM
        is_bright = t > T_HI          # t_img > UPPER_LIM
        rare_log = jnp.log(
            jnp.where(is_dark, 1.0 - o, jnp.where(is_bright, o, 1.0)) + RARE_EPS)

        if needs_mask:
            # Padded tail was zero-filled in the wrapper: o = t = 0 there, so
            # tsum/u/l already contribute zero; only 'combined' must be masked.
            valid = base_flat < (n_valid - (col_base + k * 128))
            combined = jnp.where(valid, combined, 0.0)

        main_ref[...] += combined
        tsum_ref[...] += t
        u_ref[...] += jnp.where(is_dark, rare_log, 0.0)
        l_ref[...] += jnp.where(is_bright, rare_log, 0.0)


def _pick_tile_cols(rows, cols128, itemsize):
    """Largest lane-aligned tile: ~BLOCK_BYTE_BUDGET per input block, bounded
    in-kernel unroll, and >= MIN_GRID_STEPS column tiles when the data allows."""
    by_budget = max(128, (BLOCK_BYTE_BUDGET // (rows * itemsize)) // 128 * 128)
    tile = min(cols128, by_budget, MAX_CHUNKS_PER_TILE * 128)
    tile = max(128, (tile // 128) * 128)
    if cols128 >= MIN_GRID_STEPS * 128:
        while _cdiv(cols128, tile) < MIN_GRID_STEPS and tile > 128:
            tile = max(128, (tile // 2) // 128 * 128)
    return tile


def mypsp_loss(outputs, targets, *, on_sharp=ON_SHARP, rare_p=RARE_P):
    """outputs, targets: (B, C, H, W) float arrays.  Returns scalar f32 loss."""
    assert outputs.shape == targets.shape and outputs.ndim == 4
    b, c, h, w = outputs.shape
    n = c * h * w
    itemsize = jnp.dtype(outputs.dtype).itemsize
    # Pack each image over 8 (f32) / 16 (bf16) sublane rows -> native vreg tiles.
    pack = 16 if itemsize == 2 else 8

    cols128 = _cdiv(_cdiv(n, pack), 128) * 128
    tile_cols = _pick_tile_cols(b * pack, cols128, itemsize)
    n_tiles = _cdiv(cols128, tile_cols)
    n_par = NUM_PARALLEL_CHUNKS if n_tiles >= NUM_PARALLEL_CHUNKS else 1
    tiles_per_chunk = _cdiv(n_tiles, n_par)
    cols_per_chunk = tiles_per_chunk * tile_cols
    cols_padded = n_par * cols_per_chunk
    n_pad = pack * cols_padded
    needs_mask = n_pad != n

    def _prep(x):
        flat = x.reshape(b, n)
        if n_pad != n:
            flat = jnp.pad(flat, ((0, 0), (0, n_pad - n)))   # zero tail, masked in-kernel
        return flat.reshape(b, pack, cols_padded)

    o3 = _prep(outputs)
    t3 = _prep(targets)

    kernel = functools.partial(
        _mypsp_loss_kernel,
        on_sharp=float(on_sharp),
        cols_per_chunk=cols_per_chunk,
        cols_padded=cols_padded,
        n_valid=n,
        needs_mask=needs_mask)

    in_spec = pl.BlockSpec((b, pack, tile_cols),
                           lambda p, i: (0, 0, p * tiles_per_chunk + i))
    # Lane-dense (b, pack, 128) partial-sum blocks, one per parallel chunk.
    part_spec = pl.BlockSpec((b, pack, 128), lambda p, i: (p, 0, 0))
    part_shape = jax.ShapeDtypeStruct((n_par * b, pack, 128), jnp.float32)

    main_p, t_p, u_p, l_p = pl.pallas_call(
        kernel,
        out_shape=(part_shape,) * 4,
        grid=(n_par, tiles_per_chunk),
        in_specs=[in_spec, in_spec],
        out_specs=[part_spec] * 4,
        compiler_params=pltpu.CompilerParams(
            dimension_semantics=("parallel", "arbitrary")),
    )(o3, t3)

    def _per_batch(x):                       # (n_par*b, pack, 128) -> (b,)
        return jnp.sum(x.reshape(n_par, b, pack, 128), axis=(0, 2, 3))

    # Tiny finalize on (b,)-sized arrays: rare-pixel batch-mean masks + scaling.
    total = float(b * n)
    t_mean_img = _per_batch(t_p) * (IMAGE_VAR / float(n)) + IMAGE_MEAN
    u_idx = (t_mean_img > UPPER_LIM).astype(jnp.float32)
    l_idx = (t_mean_img < LOWER_LIM).astype(jnp.float32)
    rare = -(jnp.sum(u_idx * _per_batch(u_p))
             + jnp.sum(l_idx * _per_batch(l_p))) / total
    return jnp.sum(_per_batch(main_p)) / total + float(rare_p) * rare


def _mypsp_loss_ref(outputs, targets, *, on_sharp=ON_SHARP, rare_p=RARE_P):
    """Pure-JAX reference mirroring the PyTorch forward (for validation)."""
    o = outputs.astype(jnp.float32)
    t = targets.astype(jnp.float32)
    mse = jnp.mean(((o - IMAGE_MEAN) / IMAGE_VAR - t) ** 2)
    sharp = jnp.mean(jnp.where(o < 0.5, o ** 2, (o - 1.0) ** 2))
    big_t = (t >= 0.0).astype(jnp.float32)
    small_t = (t < 0.0).astype(jnp.float32)
    smaller_o = jnp.where(o < 0.5, o, 0.0) + 1.0
    bigger_o = 1.0 - jnp.where(o >= 0.5, o, 0.0)
    hinge = jnp.mean(-big_t * jnp.log(smaller_o + HINGE_EPS)
                     - small_t * jnp.log(bigger_o + HINGE_EPS))
    t_img = t * IMAGE_VAR + IMAGE_MEAN
    t_mean = jnp.mean(t_img, axis=(1, 2, 3), keepdims=True)
    u_idx = (t_mean > UPPER_LIM).astype(jnp.float32)
    l_idx = (t_mean < LOWER_LIM).astype(jnp.float32)
    u_val = jnp.where(t_img < LOWER_LIM, jnp.log(1.0 - o + RARE_EPS), 0.0)
    l_val = jnp.where(t_img > UPPER_LIM, jnp.log(o + RARE_EPS), 0.0)
    rare = -jnp.mean(l_idx * l_val) - jnp.mean(u_idx * u_val)
    return mse + on_sharp * sharp + rare_p * rare + hinge


if __name__ == "__main__":
    root = jax.random.PRNGKey(0)

    def _make_inputs(shape, key):
        b = shape[0]
        k_o, k_mask, k_noise = jax.random.split(key, 3)
        outputs = jax.random.uniform(k_o, shape, jnp.float32, 0.01, 0.99)
        # Teachers: batch 0 mostly bright with ~10% dark pixels, remaining
        # batches mostly dark with ~10% bright pixels -> exercises both
        # rare-pixel branches (uIndex and lIndex) and both hinge branches.
        sign = jnp.array([1.0] + [-1.0] * (b - 1), jnp.float32).reshape(b, 1, 1, 1)
        flip = jax.random.bernoulli(k_mask, 0.1, shape)
        base = jnp.where(flip, -0.9 * sign, 0.9 * sign)
        noise = jax.random.uniform(k_noise, shape, jnp.float32, -0.05, 0.05)
        return outputs, base + noise

    shapes = [
        (2, 4, 16, 16),   # single tile, no padding, n_par=1
        (2, 3, 48, 64),   # multi-tile, 2 parallel chunks, padded + masked tail
        (2, 3, 7, 9),     # n % 8 != 0: pad-to-8-sublanes path + heavy masking
    ]
    for i, shape in enumerate(shapes):
        outs, tgts = _make_inputs(shape, jax.random.fold_in(root, i))
        loss = jax.block_until_ready(mypsp_loss(outs, tgts))
        ref = jax.block_until_ready(_mypsp_loss_ref(outs, tgts))
        assert jnp.allclose(loss, ref, rtol=1e-5, atol=1e-5), (shape, loss, ref)

    print("KERNEL_OK")
</pallas_src>

<mosaic_0001>
module attributes {stable_mosaic.version = 11 : i64} {
  func.func @_mypsp_loss_kernel(%arg0: i32, %arg1: i32, %arg2: memref<2x8x128xf32, #tpu.memory_space<vmem>>, %arg3: memref<2x8x128xf32, #tpu.memory_space<vmem>>, %arg4: memref<2x8x128xf32, #tpu.memory_space<vmem>>, %arg5: memref<2x8x128xf32, #tpu.memory_space<vmem>>, %arg6: memref<2x8x128xf32, #tpu.memory_space<vmem>>, %arg7: memref<2x8x128xf32, #tpu.memory_space<vmem>>) attributes {dimension_semantics = [#tpu.dimension_semantics<parallel>, #tpu.dimension_semantics<arbitrary>], iteration_bounds = array<i64: 1, 1>, scalar_prefetch = 0 : i64, scratch_operands = 0 : i64, tpu.core_type = #tpu.core_type<tc>, window_params = [{transform_indices = @transform_0, window_bounds = array<i64: 2, 8, 128>}, {transform_indices = @transform_1, window_bounds = array<i64: 2, 8, 128>}, {transform_indices = @transform_2, window_bounds = array<i64: 2, 8, 128>}, {transform_indices = @transform_3, window_bounds = array<i64: 2, 8, 128>}, {transform_indices = @transform_4, window_bounds = array<i64: 2, 8, 128>}, {transform_indices = @transform_5, window_bounds = array<i64: 2, 8, 128>}]} {
    %c0_i32 = arith.constant 0 : i32
    %0 = arith.cmpi eq, %arg1, %c0_i32 : i32
    %1 = arith.extui %0 : i1 to i32
    %c0_i32_0 = arith.constant 0 : i32
    %2 = arith.cmpi ne, %1, %c0_i32_0 : i32
    scf.if %2 {
      %cst_45 = arith.constant 0.000000e+00 : f32
      %59 = vector.broadcast %cst_45 : f32 to vector<2x8x128xf32>
      %c0_46 = arith.constant 0 : index
      %c0_47 = arith.constant 0 : index
      %c0_48 = arith.constant 0 : index
      %60 = vector.load %arg4[%c0_46, %c0_47, %c0_48] : memref<2x8x128xf32, #tpu.memory_space<vmem>>, vector<2x8x128xf32>
      tpu.vector_store %arg4[%c0_46, %c0_47, %c0_48], %59 {strides = array<i32>} : memref<2x8x128xf32, #tpu.memory_space<vmem>>, vector<2x8x128xf32>,
      %cst_49 = arith.constant 0.000000e+00 : f32
      %61 = vector.broadcast %cst_49 : f32 to vector<2x8x128xf32>
      %c0_50 = arith.constant 0 : index
      %c0_51 = arith.constant 0 : index
      %c0_52 = arith.constant 0 : index
      %62 = vector.load %arg5[%c0_50, %c0_51, %c0_52] : memref<2x8x128xf32, #tpu.memory_space<vmem>>, vector<2x8x128xf32>
      tpu.vector_store %arg5[%c0_50, %c0_51, %c0_52], %61 {strides = array<i32>} : memref<2x8x128xf32, #tpu.memory_space<vmem>>, vector<2x8x128xf32>,
      %cst_53 = arith.constant 0.000000e+00 : f32
      %63 = vector.broadcast %cst_53 : f32 to vector<2x8x128xf32>
      %c0_54 = arith.constant 0 : index
      %c0_55 = arith.constant 0 : index
      %c0_56 = arith.constant 0 : index
      %64 = vector.load %arg6[%c0_54, %c0_55, %c0_56] : memref<2x8x128xf32, #tpu.memory_space<vmem>>, vector<2x8x128xf32>
      tpu.vector_store %arg6[%c0_54, %c0_55, %c0_56], %63 {strides = array<i32>} : memref<2x8x128xf32, #tpu.memory_space<vmem>>, vector<2x8x128xf32>,
      %cst_57 = arith.constant 0.000000e+00 : f32
      %65 = vector.broadcast %cst_57 : f32 to vector<2x8x128xf32>
      %c0_58 = arith.constant 0 : index
      %c0_59 = arith.constant 0 : index
      %c0_60 = arith.constant 0 : index
      %66 = vector.load %arg7[%c0_58, %c0_59, %c0_60] : memref<2x8x128xf32, #tpu.memory_space<vmem>>, vector<2x8x128xf32>
      tpu.vector_store %arg7[%c0_58, %c0_59, %c0_60], %65 {strides = array<i32>} : memref<2x8x128xf32, #tpu.memory_space<vmem>>, vector<2x8x128xf32>,
    } else {
    }
    %c0 = arith.constant 0 : index
    %c0_1 = arith.constant 0 : index
    %c0_2 = arith.constant 0 : index
    %3 = vector.load %arg2[%c0, %c0_1, %c0_2] : memref<2x8x128xf32, #tpu.memory_space<vmem>>, vector<2x8x128xf32>
    %c0_3 = arith.constant 0 : index
    %c0_4 = arith.constant 0 : index
    %c0_5 = arith.constant 0 : index
    %4 = vector.load %arg3[%c0_3, %c0_4, %c0_5] : memref<2x8x128xf32, #tpu.memory_space<vmem>>, vector<2x8x128xf32>
    %cst = arith.constant 5.000000e-01 : f32
    %5 = vector.broadcast %cst : f32 to vector<2x8x128xf32>
    %6 = arith.subf %3, %5 : vector<2x8x128xf32>
    %cst_6 = arith.constant 2.000000e+00 : f32
    %7 = vector.broadcast %cst_6 : f32 to vector<2x8x128xf32>
    %8 = arith.mulf %6, %7 : vector<2x8x128xf32>
    %9 = arith.subf %8, %4 : vector<2x8x128xf32>
    %10 = arith.mulf %9, %9 : vector<2x8x128xf32>
    %cst_7 = arith.constant 5.000000e-01 : f32
    %11 = vector.broadcast %cst_7 : f32 to vector<2x8x128xf32>
    %12 = arith.cmpf olt, %3, %11 : vector<2x8x128xf32>
    %cst_8 = arith.constant 0.000000e+00 : f32
    %cst_9 = arith.constant 1.000000e+00 : f32
    %13 = vector.broadcast %cst_8 : f32 to vector<2x8x128xf32>
    %14 = vector.broadcast %cst_9 : f32 to vector<2x8x128xf32>
    %15 = arith.select %12, %13, %14 : vector<2x8x128xi1>, vector<2x8x128xf32>
    %16 = arith.subf %3, %15 : vector<2x8x128xf32>
    %17 = arith.mulf %16, %16 : vector<2x8x128xf32>
    %cst_10 = arith.constant 0.000000e+00 : f32
    %18 = vector.broadcast %cst_10 : f32 to vector<2x8x128xf32>
    %19 = arith.select %12, %3, %18 : vector<2x8x128xi1>, vector<2x8x128xf32>
    %cst_11 = arith.constant 0.000000e+00 : f32
    %20 = vector.broadcast %cst_11 : f32 to vector<2x8x128xf32>
    %21 = arith.cmpf oge, %4, %20 : vector<2x8x128xf32>
    %22 = arith.subf %19, %3 : vector<2x8x128xf32>
    %23 = arith.select %21, %19, %22 : vector<2x8x128xi1>, vector<2x8x128xf32>
    %cst_12 = arith.constant 1.001000e+00 : f32
    %24 = vector.broadcast %cst_12 : f32 to vector<2x8x128xf32>
    %25 = arith.addf %23, %24 : vector<2x8x128xf32>
    %26 = math.log %25 : vector<2x8x128xf32>
    %cst_13 = arith.constant 2.000000e+00 : f32
    %27 = vector.broadcast %cst_13 : f32 to vector<2x8x128xf32>
    %28 = arith.mulf %27, %17 : vector<2x8x128xf32>
    %29 = arith.addf %10, %28 : vector<2x8x128xf32>
    %30 = arith.subf %29, %26 : vector<2x8x128xf32>
    %cst_14 = arith.constant -4.000000e-01 : f32
    %31 = vector.broadcast %cst_14 : f32 to vector<2x8x128xf32>
    %32 = arith.cmpf olt, %4, %31 : vector<2x8x128xf32>
    %cst_15 = arith.constant 4.000000e-01 : f32
    %33 = vector.broadcast %cst_15 : f32 to vector<2x8x128xf32>
    %34 = arith.cmpf ogt, %4, %33 : vector<2x8x128xf32>
    %cst_16 = arith.constant 1.000000e+00 : f32
    %35 = vector.broadcast %cst_16 : f32 to vector<2x8x128xf32>
    %36 = arith.subf %35, %3 : vector<2x8x128xf32>
    %cst_17 = arith.constant 1.000000e+00 : f32
    %37 = vector.broadcast %cst_17 : f32 to vector<2x8x128xf32>
    %38 = arith.select %34, %3, %37 : vector<2x8x128xi1>, vector<2x8x128xf32>
    %39 = arith.select %32, %36, %38 : vector<2x8x128xi1>, vector<2x8x128xf32>
    %cst_18 = arith.constant 1.000000e-03 : f32
    %40 = vector.broadcast %cst_18 : f32 to vector<2x8x128xf32>
    %41 = arith.addf %39, %40 : vector<2x8x128xf32>
    %42 = math.log %41 : vector<2x8x128xf32>
    %c0_19 = arith.constant 0 : index
    %c0_20 = arith.constant 0 : index
    %c0_21 = arith.constant 0 : index
    %43 = vector.load %arg4[%c0_19, %c0_20, %c0_21] : memref<2x8x128xf32, #tpu.memory_space<vmem>>, vector<2x8x128xf32>
    %44 = arith.addf %43, %30 : vector<2x8x128xf32>
    %c0_22 = arith.constant 0 : index
    %c0_23 = arith.constant 0 : index
    %c0_24 = arith.constant 0 : index
    %45 = vector.load %arg4[%c0_22, %c0_23, %c0_24] : memref<2x8x128xf32, #tpu.memory_space<vmem>>, vector<2x8x128xf32>
    tpu.vector_store %arg4[%c0_22, %c0_23, %c0_24], %44 {strides = array<i32>} : memref<2x8x128xf32, #tpu.memory_space<vmem>>, vector<2x8x128xf32>,
    %c0_25 = arith.constant 0 : index
    %c0_26 = arith.constant 0 : index
    %c0_27 = arith.constant 0 : index
    %46 = vector.load %arg5[%c0_25, %c0_26, %c0_27] : memref<2x8x128xf32, #tpu.memory_space<vmem>>, vector<2x8x128xf32>
    %47 = arith.addf %46, %4 : vector<2x8x128xf32>
    %c0_28 = arith.constant 0 : index
    %c0_29 = arith.constant 0 : index
    %c0_30 = arith.constant 0 : index
    %48 = vector.load %arg5[%c0_28, %c0_29, %c0_30] : memref<2x8x128xf32, #tpu.memory_space<vmem>>, vector<2x8x128xf32>
    tpu.vector_store %arg5[%c0_28, %c0_29, %c0_30], %47 {strides = array<i32>} : memref<2x8x128xf32, #tpu.memory_space<vmem>>, vector<2x8x128xf32>,
    %c0_31 = arith.constant 0 : index
    %c0_32 = arith.constant 0 : index
    %c0_33 = arith.constant 0 : index
    %49 = vector.load %arg6[%c0_31, %c0_32, %c0_33] : memref<2x8x128xf32, #tpu.memory_space<vmem>>, vector<2x8x128xf32>
    %cst_34 = arith.constant 0.000000e+00 : f32
    %50 = vector.broadcast %cst_34 : f32 to vector<2x8x128xf32>
    %51 = arith.select %32, %42, %50 : vector<2x8x128xi1>, vector<2x8x128xf32>
    %52 = arith.addf %49, %51 : vector<2x8x128xf32>
    %c0_35 = arith.constant 0 : index
    %c0_36 = arith.constant 0 : index
    %c0_37 = arith.constant 0 : index
    %53 = vector.load %arg6[%c0_35, %c0_36, %c0_37] : memref<2x8x128xf32, #tpu.memory_space<vmem>>, vector<2x8x128xf32>
    tpu.vector_store %arg6[%c0_35, %c0_36, %c0_37], %52 {strides = array<i32>} : memref<2x8x128xf32, #tpu.memory_space<vmem>>, vector<2x8x128xf32>,
    %c0_38 = arith.constant 0 : index
    %c0_39 = arith.constant 0 : index
    %c0_40 = arith.constant 0 : index
    %54 = vector.load %arg7[%c0_38, %c0_39, %c0_40] : memref<2x8x128xf32, #tpu.memory_space<vmem>>, vector<2x8x128xf32>
    %cst_41 = arith.constant 0.000000e+00 : f32
    %55 = vector.broadcast %cst_41 : f32 to vector<2x8x128xf32>
    %56 = arith.select %34, %42, %55 : vector<2x8x128xi1>, vector<2x8x128xf32>
    %57 = arith.addf %54, %56 : vector<2x8x128xf32>
    %c0_42 = arith.constant 0 : index
    %c0_43 = arith.constant 0 : index
    %c0_44 = arith.constant 0 : index
    %58 = vector.load %arg7[%c0_42, %c0_43, %c0_44] : memref<2x8x128xf32, #tpu.memory_space<vmem>>, vector<2x8x128xf32>
    tpu.vector_store %arg7[%c0_42, %c0_43, %c0_44], %57 {strides = array<i32>} : memref<2x8x128xf32, #tpu.memory_space<vmem>>, vector<2x8x128xf32>,
    return
  }
  func.func @transform_0(%arg0: i32, %arg1: i32) -> (i32, i32, i32) {
    %c1_i32 = arith.constant 1 : i32
    %0 = arith.muli %arg0, %c1_i32 : i32
    %1 = arith.addi %0, %arg1 : i32
    %c0_i32 = arith.constant 0 : i32
    %c0_i32_0 = arith.constant 0 : i32
    %c0_i32_1 = arith.constant 0 : i32
    return %c0_i32, %c0_i32_0, %1 : i32, i32, i32
  }
  func.func @transform_1(%arg0: i32, %arg1: i32) -> (i32, i32, i32) {
    %c1_i32 = arith.constant 1 : i32
    %0 = arith.muli %arg0, %c1_i32 : i32
    %1 = arith.addi %0, %arg1 : i32
    %c0_i32 = arith.constant 0 : i32
    %c0_i32_0 = arith.constant 0 : i32
    %c0_i32_1 = arith.constant 0 : i32
    return %c0_i32, %c0_i32_0, %1 : i32, i32, i32
  }
  func.func @transform_2(%arg0: i32, %arg1: i32) -> (i32, i32, i32) {
    %c0_i32 = arith.constant 0 : i32
    %c0_i32_0 = arith.constant 0 : i32
    %c0_i32_1 = arith.constant 0 : i32
    return %arg0, %c0_i32, %c0_i32_0 : i32, i32, i32
  }
  func.func @transform_3(%arg0: i32, %arg1: i32) -> (i32, i32, i32) {
    %c0_i32 = arith.constant 0 : i32
    %c0_i32_0 = arith.constant 0 : i32
    %c0_i32_1 = arith.constant 0 : i32
    return %arg0, %c0_i32, %c0_i32_0 : i32, i32, i32
  }
  func.func @transform_4(%arg0: i32, %arg1: i32) -> (i32, i32, i32) {
    %c0_i32 = arith.constant 0 : i32
    %c0_i32_0 = arith.constant 0 : i32
    %c0_i32_1 = arith.constant 0 : i32
    return %arg0, %c0_i32, %c0_i32_0 : i32, i32, i32
  }
  func.func @transform_5(%arg0: i32, %arg1: i32) -> (i32, i32, i32) {
    %c0_i32 = arith.constant 0 : i32
    %c0_i32_0 = arith.constant 0 : i32
    %c0_i32_1 = arith.constant 0 : i32
    return %arg0, %c0_i32, %c0_i32_0 : i32, i32, i32
  }
}

</mosaic_0001>

<llo_original>
// kernel: tpu_custom_call.1
$region0: #{tpu_custom_call.1}
  #allocation0 [shape = 'u32[]', space=smem, size = 0x4, offset = 0x4, fixed_abs, tag = 'smem constant byte address 0x4 - core index']
  #allocation1 [shape = 'u32[144,128]{1,0:T(1,128)}', space=vmem, size = 0x12000, scoped, tag = 'internal scratch']
  %s0 = inlined_call_operand.hbm [shape: f32[2,8,128], index: 0, kind: input, shape index: {}]
  %s1 = inlined_call_operand.hbm [shape: f32[2,8,128], index: 1, kind: input, shape index: {}]
  %s2 = inlined_call_operand.hbm [shape: f32[2,8,128], index: 2, kind: output, shape index: {0}]
  %s3 = inlined_call_operand.hbm [shape: f32[2,8,128], index: 3, kind: output, shape index: {1}]
  %s4 = inlined_call_operand.hbm [shape: f32[2,8,128], index: 4, kind: output, shape index: {2}]
  %s5 = inlined_call_operand.hbm [shape: f32[2,8,128], index: 5, kind: output, shape index: {3}]
  %6 = xla_tuple %s2, %s3, %s4, %s5
  %s7 = sld [smem:[#allocation0]]
  $region54: #{tpu_custom_call.1} parent=0
    _
  %s9 = ssub.s32 1, %s7
  %s10 = scalar_select 0, %s9, %s7
  $region1: #{tpu_custom_call.1} parent=0
    #allocation2 [shape = 'u8[8192]{0}', space=vmem, size = 0x2000, scoped, tag = 'input window, operand 0, single buffered']
    #allocation3 [shape = 's32[1]{0}', space=sflag, size = 0x4, scoped, tag = 'scoped memory for tpu_custom_call.1']
    #allocation4 [shape = 's32[1]{0}', space=sflag, size = 0x4, scoped, tag = 'scoped memory for tpu_custom_call.1']
    #allocation5 [shape = 'u8[8192]{0}', space=vmem, size = 0x2000, scoped, tag = 'input window, operand 1, single buffered']
    #allocation6 [shape = 's32[1]{0}', space=sflag, size = 0x4, scoped, tag = 'scoped memory for tpu_custom_call.1']
    #allocation7 [shape = 'u8[8192]{0}', space=vmem, size = 0x2000, scoped, tag = 'output window, operand 0, single buffered']
    #allocation8 [shape = 'u8[8192]{0}', space=vmem, size = 0x2000, scoped, tag = 'output window, operand 1, single buffered']
    #allocation9 [shape = 's32[1]{0}', space=sflag, size = 0x4, scoped, tag = 'scoped memory for tpu_custom_call.1']
    #allocation10 [shape = 'u8[8192]{0}', space=vmem, size = 0x2000, scoped, tag = 'output window, operand 2, single buffered']
    #allocation11 [shape = 'u8[8192]{0}', space=vmem, size = 0x2000, scoped, tag = 'output window, operand 3, single buffered']
    #allocation12 [shape = 's32[1]{0}', space=sflag, size = 0x4, scoped, tag = 'scoped memory for tpu_custom_call.1']
    %11 = vsyncpa [#allocation3], 0
    %12 = vsyncpa [#allocation6], 0
    %13 = vsyncpa [#allocation4], 0
    %14 = vsyncpa [#allocation9], 0
    %15 = vsyncpa [#allocation12], 0
    // Predicated region
    $region2: #{tpu_custom_call.1} parent=1 // pred_check
      _
    $region3: #{tpu_custom_call.1} parent=1 // pred_check_branch
      %17 = sbr.rel (0) target = $region5
    $region4: #{tpu_custom_call.1} parent=1 // pred_region
      %s18 = sadd.s32 0, 0
      %s20 = ssub.s32 256, 256
      %21 = vsyncadd [#allocation3], %s20
      %s22 = smul.addr %s18, 128
      %s23 = scalar_lea.hbm %s0, %s22
      %s24 = sshll.u32 [#allocation2], 4
      %s25 = int_to_ptr.vmem [resolvable:$true] %s24
      %30 = dma.hbm_to_vmem [thread:$0]  %s23, 256, %s25, [#allocation3], 128, 128, 8
    $region5: #{tpu_custom_call.1} parent=1 // pred_fallthru
      _
    // Predicated region
    $region6: #{tpu_custom_call.1} parent=1 // pred_check
      _
    $region7: #{tpu_custom_call.1} parent=1 // pred_check_branch
      %32 = sbr.rel (0) target = $region9
    $region8: #{tpu_custom_call.1} parent=1 // pred_region
      %s33 = sadd.s32 0, 0
      %s35 = ssub.s32 256, 256
      %36 = vsyncadd [#allocation6], %s35
      %s37 = smul.addr %s33, 128
      %s38 = scalar_lea.hbm %s1, %s37
      %s39 = sshll.u32 [#allocation5], 4
      %s40 = int_to_ptr.vmem [resolvable:$true] %s39
      %45 = dma.hbm_to_vmem [thread:$0]  %s38, 256, %s40, [#allocation6], 128, 128, 8
    $region9: #{tpu_custom_call.1} parent=1 // pred_fallthru
      _
    // Predicated region
    $region10: #{tpu_custom_call.1} parent=1 // pred_check
      _
    $region11: #{tpu_custom_call.1} parent=1 // pred_check_branch
      %47 = sbr.rel (0) target = $region13
    $region12: #{tpu_custom_call.1} parent=1 // pred_region
      %48 = dma.done [#allocation3], 256
    $region13: #{tpu_custom_call.1} parent=1 // pred_fallthru
      _
    // Predicated region
    $region14: #{tpu_custom_call.1} parent=1 // pred_check
      _
    $region15: #{tpu_custom_call.1} parent=1 // pred_check_branch
      %50 = sbr.rel (0) target = $region17
    $region16: #{tpu_custom_call.1} parent=1 // pred_region
      %51 = dma.done [#allocation6], 256
    $region17: #{tpu_custom_call.1} parent=1 // pred_fallthru
      _
    %s52 = sadd.s32 0, 0
    %s53 = sadd.s32 0, 0
    %p54 = scmp.eq.s32.totalorder 0, 0
    // Predicated region
    $region18: #{tpu_custom_call.1} parent=1 // pred_check
      %p55 = pneg %p54
    $region19: #{tpu_custom_call.1} parent=1 // pred_check_branch
      %57 = sbr.rel (%p55) target = $region21
    $region20: #{tpu_custom_call.1} parent=1 // pred_region
      %58 = vst [vmem:[#allocation7] sm:$0xff] 0.0
      %59 = vst [vmem:[#allocation7 + $0x8] sm:$0xff] 0.0
      %60 = vst [vmem:[#allocation8] sm:$0xff] 0.0
      %61 = vst [vmem:[#allocation8 + $0x8] sm:$0xff] 0.0
      %62 = vst [vmem:[#allocation10] sm:$0xff] 0.0
      %63 = vst [vmem:[#allocation10 + $0x8] sm:$0xff] 0.0
      %64 = vst [vmem:[#allocation11] sm:$0xff] 0.0
      %65 = vst [vmem:[#allocation11 + $0x8] sm:$0xff] 0.0
    $region21: #{tpu_custom_call.1} parent=1 // pred_fallthru
      _
    %v66 = vld [vmem:[#allocation2] sm:$0xff]
    %v67 = vld [vmem:[#allocation2 + $0x8] sm:$0xff]
    %v68 = vld [vmem:[#allocation5] sm:$0xff]
    %v69 = vld [vmem:[#allocation5 + $0x8] sm:$0xff]
    %v70 = vsub.f32 %v66, 0.5
    %v71 = vsub.f32 %v67, 0.5
    %v72 = vmul.f32 %v70, 2.0
    %v73 = vmul.f32 %v71, 2.0
    %v74 = vsub.f32 %v72, %v68
    %v75 = vsub.f32 %v73, %v69
    %v76 = vmul.f32 %v74, %v74
    %v77 = vmul.f32 %v75, %v75
    %vm78 = vcmp.lt.f32.partialorder %v66, 0.5
    %vm79 = vcmp.lt.f32.partialorder %v67, 0.5
    %v80 = vsel %vm78, 0.0, 1.0
    %v81 = vsel %vm79, 0.0, 1.0
    %v82 = vsub.f32 %v66, %v80
    %v83 = vsub.f32 %v67, %v81
    %v84 = vmul.f32 %v82, %v82
    %v85 = vmul.f32 %v83, %v83
    %v86 = vsel %vm78, %v66, 0.0
    %v87 = vsel %vm79, %v67, 0.0
    %vm88 = vcmp.ge.f32.partialorder %v68, 0.0
    %vm89 = vcmp.ge.f32.partialorder %v69, 0.0
    %v90 = vsub.f32 %v86, %v66
    %v91 = vsub.f32 %v87, %v67
    %v92 = vsel %vm88, %v86, %v90
    %v93 = vsel %vm89, %v87, %v91
    %v94 = vadd.f32 %v92, 1.001
    %v95 = vadd.f32 %v93, 1.001
    %v96 = vlog2.pop %v94
    %v97 = vmul.f32 %v96, 0.6931472
    %v98 = vlog2.pop %v95
    %v99 = vmul.f32 %v98, 0.6931472
    %v100 = vmul.f32 %v84, 2.0
    %v101 = vmul.f32 %v85, 2.0
    %v102 = vadd.f32 %v76, %v100
    %v103 = vadd.f32 %v77, %v101
    %v104 = vsub.f32 %v102, %v97
    %v105 = vsub.f32 %v103, %v99
    %vm106 = vcmp.lt.f32.partialorder %v68, -0.4
    %vm107 = vcmp.lt.f32.partialorder %v69, -0.4
    %vm108 = vcmp.gt.f32.partialorder %v68, 0.4
    %vm109 = vcmp.gt.f32.partialorder %v69, 0.4
    %v110 = vsub.f32 1.0, %v66
    %v111 = vsub.f32 1.0, %v67
    %v112 = vsel %vm108, %v66, 1.0
    %v113 = vsel %vm109, %v67, 1.0
    %v114 = vsel %vm106, %v110, %v112
    %v115 = vsel %vm107, %v111, %v113
    %v116 = vadd.f32 %v114, 0.001
    %v117 = vadd.f32 %v115, 0.001
    %v118 = vlog2.pop %v116
    %v119 = vmul.f32 %v118, 0.6931472
    %v120 = vlog2.pop %v117
    %v121 = vmul.f32 %v120, 0.6931472
    %v122 = vld [vmem:[#allocation7] sm:$0xff]
    %v123 = vld [vmem:[#allocation7 + $0x8] sm:$0xff]
    %v124 = vadd.f32 %v122, %v104
    %v125 = vadd.f32 %v123, %v105
    %126 = vst [vmem:[#allocation7] sm:$0xff] %v124
    %127 = vst [vmem:[#allocation7 + $0x8] sm:$0xff] %v125
    %v128 = vld [vmem:[#allocation8] sm:$0xff]
    %v129 = vld [vmem:[#allocation8 + $0x8] sm:$0xff]
    %v130 = vadd.f32 %v128, %v68
    %v131 = vadd.f32 %v129, %v69
    %132 = vst [vmem:[#allocation8] sm:$0xff] %v130
    %133 = vst [vmem:[#allocation8 + $0x8] sm:$0xff] %v131
    %v134 = vld [vmem:[#allocation10] sm:$0xff]
    %v135 = vld [vmem:[#allocation10 + $0x8] sm:$0xff]
    %v136 = vsel %vm106, %v119, 0.0
    %v137 = vsel %vm107, %v121, 0.0
    %v138 = vadd.f32 %v134, %v136
    %v139 = vadd.f32 %v135, %v137
    %140 = vst [vmem:[#allocation10] sm:$0xff] %v138
    %141 = vst [vmem:[#allocation10 + $0x8] sm:$0xff] %v139
    %v142 = vld [vmem:[#allocation11] sm:$0xff]
    %v143 = vld [vmem:[#allocation11 + $0x8] sm:$0xff]
    %v144 = vsel %vm108, %v119, 0.0
    %v145 = vsel %vm109, %v121, 0.0
    %v146 = vadd.f32 %v142, %v144
    %v147 = vadd.f32 %v143, %v145
    %148 = vst [vmem:[#allocation11] sm:$0xff] %v146
    %149 = vst [vmem:[#allocation11 + $0x8] sm:$0xff] %v147
    // Predicated region
    $region22: #{tpu_custom_call.1} parent=1 // pred_check
      _
    $region23: #{tpu_custom_call.1} parent=1 // pred_check_branch
      %151 = sbr.rel (0) target = $region25
    $region24: #{tpu_custom_call.1} parent=1 // pred_region
      %s153 = ssub.s32 256, 256
      %154 = vsyncadd [#allocation4], %s153
      %s155 = sshll.u32 [#allocation7], 4
      %s156 = int_to_ptr.vmem [resolvable:$true] %s155
      %161 = dma.vmem_to_hbm [thread:$0]  %s156, 256, %s2, [#allocation4], 128, 128, 8
    $region25: #{tpu_custom_call.1} parent=1 // pred_fallthru
      _
    // Predicated region
    $region26: #{tpu_custom_call.1} parent=1 // pred_check
      _
    $region27: #{tpu_custom_call.1} parent=1 // pred_check_branch
      %163 = sbr.rel (0) target = $region29
    $region28: #{tpu_custom_call.1} parent=1 // pred_region
      %s165 = ssub.s32 256, 256
      %166 = vsyncadd [#allocation9], %s165
      %s167 = sshll.u32 [#allocation8], 4
      %s168 = int_to_ptr.vmem [resolvable:$true] %s167
      %173 = dma.vmem_to_hbm [thread:$0]  %s168, 256, %s3, [#allocation9], 128, 128, 8
    $region29: #{tpu_custom_call.1} parent=1 // pred_fallthru
      _
    // Predicated region
    $region30: #{tpu_custom_call.1} parent=1 // pred_check
      _
    $region31: #{tpu_custom_call.1} parent=1 // pred_check_branch
      %175 = sbr.rel (0) target = $region33
    $region32: #{tpu_custom_call.1} parent=1 // pred_region
      %s177 = ssub.s32 256, 256
      %178 = vsyncadd [#allocation9], %s177
      %s179 = sshll.u32 [#allocation10], 4
      %s180 = int_to_ptr.vmem [resolvable:$true] %s179
      %185 = dma.vmem_to_hbm [thread:$0]  %s180, 256, %s4, [#allocation9], 128, 128, 8
    $region33: #{tpu_custom_call.1} parent=1 // pred_fallthru
      _
    // Predicated region
    $region34: #{tpu_custom_call.1} parent=1 // pred_check
      _
    $region35: #{tpu_custom_call.1} parent=1 // pred_check_branch
      %187 = sbr.rel (0) target = $region37
    $region36: #{tpu_custom_call.1} parent=1 // pred_region
      %s189 = ssub.s32 256, 256
      %190 = vsyncadd [#allocation12], %s189
      %s191 = sshll.u32 [#allocation11], 4
      %s192 = int_to_ptr.vmem [resolvable:$true] %s191
      %197 = dma.vmem_to_hbm [thread:$0]  %s192, 256, %s5, [#allocation12], 128, 128, 8
    $region37: #{tpu_custom_call.1} parent=1 // pred_fallthru
      _
    // Predicated region
    $region38: #{tpu_custom_call.1} parent=1 // pred_check
      _
    $region39: #{tpu_custom_call.1} parent=1 // pred_check_branch
      %199 = sbr.rel (0) target = $region41
    $region40: #{tpu_custom_call.1} parent=1 // pred_region
      %200 = dma.done [#allocation4], 256
    $region41: #{tpu_custom_call.1} parent=1 // pred_fallthru
      _
    // Predicated region
    $region42: #{tpu_custom_call.1} parent=1 // pred_check
      _
    $region43: #{tpu_custom_call.1} parent=1 // pred_check_branch
      %202 = sbr.rel (0) target = $region45
    $region44: #{tpu_custom_call.1} parent=1 // pred_region
      %203 = dma.done [#allocation9], 256
    $region45: #{tpu_custom_call.1} parent=1 // pred_fallthru
      _
    // Predicated region
    $region46: #{tpu_custom_call.1} parent=1 // pred_check
      _
    $region47: #{tpu_custom_call.1} parent=1 // pred_check_branch
      %205 = sbr.rel (0) target = $region49
    $region48: #{tpu_custom_call.1} parent=1 // pred_region
      %206 = dma.done [#allocation9], 256
    $region49: #{tpu_custom_call.1} parent=1 // pred_fallthru
      _
    // Predicated region
    $region50: #{tpu_custom_call.1} parent=1 // pred_check
      _
    $region51: #{tpu_custom_call.1} parent=1 // pred_check_branch
      %208 = sbr.rel (0) target = $region53
    $region52: #{tpu_custom_call.1} parent=1 // pred_region
      %209 = dma.done [#allocation12], 256
    $region53: #{tpu_custom_call.1} parent=1 // pred_fallthru
      _
    %210 = vsyncpa [#allocation3], 1
    %211 = vsyncpa [#allocation6], 1
    %212 = vsyncpa [#allocation4], 1
    %213 = vsyncpa [#allocation9], 1
    %214 = vsyncpa [#allocation12], 1

</llo_original>
